<compile_context>
chip_gen: v7x
topology: tpu7x:2x2x1
jax: 0.10.0
libtpu: 0.0.40
codegen_flags: <defaults>
</compile_context>

<pallas_src>
import jax
import jax.numpy as jnp
from jax.experimental import pallas as pl
from jax.experimental.pallas import tpu as pltpu


def _round_up(x, m):
    return ((x + m - 1) // m) * m


def gcn_kernel(a_ref, x_ref, w_ref, b_ref, o_ref, acc_ref):
    k = pl.program_id(1)

    @pl.when(k == 0)
    def _():
        acc_ref[...] = jnp.zeros_like(acc_ref)

    # Per-K-tile feature transform: (TK, Cin) @ (Cin, Cout_pad) -> f32.
    xw = jnp.dot(x_ref[...], w_ref[...], preferred_element_type=jnp.float32)
    # Normalized aggregation: (TM, TK) @ (TK, Cout_pad), f32 accumulation.
    acc_ref[...] += jnp.dot(a_ref[...], xw.astype(a_ref.dtype),
                            preferred_element_type=jnp.float32)

    # Bias added exactly once, in the epilogue (not per K step).
    @pl.when(k == pl.num_programs(1) - 1)
    def _():
        o_ref[...] = (acc_ref[...] + b_ref[...]).astype(o_ref.dtype)


def gcn_conv_pallas(x, a_norm, weight, bias, *, tm_max=512, tk_max=1024):
    """x: [N, Cin], a_norm: [N, N], weight: [Cin, Cout], bias: [Cout]."""
    N, Cin = x.shape
    Cout = weight.shape[1]

    # Tile / padding selection (lane-aligned, VMEM-safe on v5e/v6e/v7x).
    n128 = _round_up(N, 128)
    if n128 > tk_max:
        tm, tk = tm_max, tk_max          # 512 x 1024 bf16 A tiles
        n_pad = _round_up(N, tk_max)     # tk_max is a multiple of tm_max
    else:
        tm = tk = n128                   # small graph: one tile per axis
        n_pad = n128
    cout_pad = _round_up(Cout, 128)      # lane-dense output / accumulator

    # Pad and cast streamed operands to bf16 (f32 accumulation in-kernel).
    a_p = jnp.zeros((n_pad, n_pad), jnp.bfloat16).at[:N, :N].set(
        a_norm.astype(jnp.bfloat16))
    x_p = jnp.zeros((n_pad, Cin), jnp.bfloat16).at[:N, :].set(
        x.astype(jnp.bfloat16))
    w_p = jnp.zeros((Cin, cout_pad), jnp.bfloat16).at[:, :Cout].set(
        weight.astype(jnp.bfloat16))
    b_p = jnp.zeros((1, cout_pad), jnp.float32).at[0, :Cout].set(
        bias.astype(jnp.float32))

    grid = (n_pad // tm, n_pad // tk)

    out = pl.pallas_call(
        gcn_kernel,
        out_shape=jax.ShapeDtypeStruct((n_pad, cout_pad), jnp.float32),
        grid_spec=pltpu.PrefetchScalarGridSpec(
            num_scalar_prefetch=0,
            grid=grid,
            in_specs=[
                pl.BlockSpec((tm, tk), lambda i, k: (i, k)),        # A_norm tile
                pl.BlockSpec((tk, Cin), lambda i, k: (k, 0)),       # X K-tile
                pl.BlockSpec((Cin, cout_pad), lambda i, k: (0, 0)),  # W (resident)
                pl.BlockSpec((1, cout_pad), lambda i, k: (0, 0)),    # bias (resident)
            ],
            out_specs=pl.BlockSpec((tm, cout_pad), lambda i, k: (i, 0)),
            scratch_shapes=[pltpu.VMEM((tm, cout_pad), jnp.float32)],
        ),
        compiler_params=pltpu.CompilerParams(
            dimension_semantics=("parallel", "arbitrary")),
    )(a_p, x_p, w_p, b_p)

    return out[:N, :Cout]


def build_normalized_adjacency(edge_index, num_nodes):
    """Dense \\hat{A} = D^{-1/2} (A + I) D^{-1/2}, A[dst, src] = 1 per edge."""
    # TODO(synk): for large/sparse graphs, replace this dense O(N^2) build with
    # a CSR + scalar-prefetched gather kernel; dense scatter has no clean Pallas
    # equivalent, so it stays in plain JAX.
    src = edge_index[0]
    dst = edge_index[1]
    a = jnp.zeros((num_nodes, num_nodes), dtype=jnp.float32)
    a = a.at[dst, src].add(1.0)                      # message j -> i
    a = a + jnp.eye(num_nodes, dtype=jnp.float32)    # self loops
    deg = jnp.sum(a, axis=1)                         # in-degree incl. self loop
    d_inv_sqrt = jnp.where(deg > 0, 1.0 / jnp.sqrt(deg), 0.0)
    return a * d_inv_sqrt[:, None] * d_inv_sqrt[None, :]


def linear_encoder_forward(x, edge_index, weight, bias):
    a_norm = build_normalized_adjacency(edge_index, x.shape[0])
    return gcn_conv_pallas(x, a_norm, weight, bias)


if __name__ == "__main__":
    key = jax.random.PRNGKey(0)
    k_x, k_e1, k_e2, k_w = jax.random.split(key, 4)

    num_nodes = 16
    in_channels = 4
    out_channels = 32
    num_edges = 48

    # Node features and a random directed edge list [2, E].
    x = jax.random.normal(k_x, (num_nodes, in_channels), dtype=jnp.float32)
    src = jax.random.randint(k_e1, (num_edges,), 0, num_nodes, dtype=jnp.int32)
    dst = jax.random.randint(k_e2, (num_edges,), 0, num_nodes, dtype=jnp.int32)
    edge_index = jnp.stack([src, dst], axis=0)

    # Deterministic parameter init (GCNConv: glorot weight, zero bias).
    limit = (6.0 / (in_channels + out_channels)) ** 0.5
    weight = jax.random.uniform(
        k_w, (in_channels, out_channels), dtype=jnp.float32,
        minval=-limit, maxval=limit)
    bias = jnp.zeros((out_channels,), dtype=jnp.float32)

    fwd = jax.jit(linear_encoder_forward)
    out = fwd(x, edge_index, weight, bias)
    out = jax.block_until_ready(out)

    # Pure-JAX f32 reference check (kernel streams bf16 operands with f32
    # accumulation, so allow bf16-operand-level tolerance).
    a_norm = build_normalized_adjacency(edge_index, num_nodes)
    ref = a_norm @ (x @ weight) + bias[None, :]
    assert out.shape == (num_nodes, out_channels)
    assert jnp.allclose(out, ref, atol=5e-2, rtol=5e-2), float(
        jnp.max(jnp.abs(out - ref)))

    print("KERNEL_OK")
</pallas_src>

<mosaic_0001>
module attributes {stable_mosaic.version = 11 : i64} {
  func.func private @main(%arg0: i32) attributes {dimension_semantics = [#tpu.dimension_semantics<core_parallel>], iteration_bounds = array<i64: 2>, tpu.core_type = #tpu.core_type<sc_scalar_subcore>, window_params = []} {
    return
  }
}

module attributes {stable_mosaic.version = 11 : i64} {
  func.func private @main(%arg0: i32) attributes {dimension_semantics = [#tpu.dimension_semantics<core_parallel>], iteration_bounds = array<i64: 2>, tpu.core_type = #tpu.core_type<sc_scalar_subcore>, window_params = []} {
    return
  }
}

module attributes {stable_mosaic.version = 11 : i64} {
  func.func @gcn_kernel(%arg0: i32, %arg1: i32, %arg2: memref<128x128xbf16, #tpu.memory_space<vmem>>, %arg3: memref<128x4xbf16, #tpu.memory_space<vmem>>, %arg4: memref<4x128xbf16, #tpu.memory_space<vmem>>, %arg5: memref<1x128xf32, #tpu.memory_space<vmem>>, %arg6: memref<128x128xf32, #tpu.memory_space<vmem>>, %arg7: memref<128x128xf32, #tpu.memory_space<vmem>>) attributes {dimension_semantics = [#tpu.dimension_semantics<parallel>, #tpu.dimension_semantics<arbitrary>], iteration_bounds = array<i64: 1, 1>, scalar_prefetch = 0 : i64, scratch_operands = 1 : i64, tpu.core_type = #tpu.core_type<tc>, window_params = [{transform_indices = @transform_0, window_bounds = array<i64: 128, 128>}, {transform_indices = @transform_1, window_bounds = array<i64: 128, 4>}, {pipeline_mode = #tpu.pipeline_mode<synchronous>, transform_indices = @transform_2, window_bounds = array<i64: 4, 128>}, {pipeline_mode = #tpu.pipeline_mode<synchronous>, transform_indices = @transform_3, window_bounds = array<i64: 1, 128>}, {transform_indices = @transform_4, window_bounds = array<i64: 128, 128>}]} {
    %c0_i32 = arith.constant 0 : i32
    %0 = arith.cmpi eq, %arg1, %c0_i32 : i32
    %1 = arith.extui %0 : i1 to i32
    %c0_i32_0 = arith.constant 0 : i32
    %2 = arith.cmpi ne, %1, %c0_i32_0 : i32
    scf.if %2 {
      %cst_13 = arith.constant 0.000000e+00 : f32
      %15 = vector.broadcast %cst_13 : f32 to vector<128x128xf32>
      %c0_14 = arith.constant 0 : index
      %c0_15 = arith.constant 0 : index
      %16 = vector.load %arg7[%c0_14, %c0_15] : memref<128x128xf32, #tpu.memory_space<vmem>>, vector<128x128xf32>
      tpu.vector_store %arg7[%c0_14, %c0_15], %15 {strides = array<i32>} : memref<128x128xf32, #tpu.memory_space<vmem>>, vector<128x128xf32>,
    } else {
    }
    %c0 = arith.constant 0 : index
    %c0_1 = arith.constant 0 : index
    %3 = vector.load %arg3[%c0, %c0_1] : memref<128x4xbf16, #tpu.memory_space<vmem>>, vector<128x4xbf16>
    %c0_2 = arith.constant 0 : index
    %c0_3 = arith.constant 0 : index
    %4 = vector.load %arg4[%c0_2, %c0_3] : memref<4x128xbf16, #tpu.memory_space<vmem>>, vector<4x128xbf16>
    %cst = arith.constant dense<0.000000e+00> : vector<128x128xf32>
    %5 = tpu.matmul %3, %4, %cst {dimension_numbers = #tpu.dot_dimension_numbers<[1], [0], [0], [1], [0, 0, 1, 1], [], []>} : vector<128x4xbf16>, vector<4x128xbf16>, vector<128x128xf32> -> vector<128x128xf32>
    %c0_4 = arith.constant 0 : index
    %c0_5 = arith.constant 0 : index
    %6 = vector.load %arg7[%c0_4, %c0_5] : memref<128x128xf32, #tpu.memory_space<vmem>>, vector<128x128xf32>
    %c0_6 = arith.constant 0 : index
    %c0_7 = arith.constant 0 : index
    %7 = vector.load %arg2[%c0_6, %c0_7] : memref<128x128xbf16, #tpu.memory_space<vmem>>, vector<128x128xbf16>
    %8 = arith.truncf %5 : vector<128x128xf32> to vector<128x128xbf16>
    %cst_8 = arith.constant dense<0.000000e+00> : vector<128x128xf32>
    %9 = tpu.matmul %7, %8, %cst_8 {dimension_numbers = #tpu.dot_dimension_numbers<[1], [0], [0], [1], [0, 0, 1, 1], [], []>} : vector<128x128xbf16>, vector<128x128xbf16>, vector<128x128xf32> -> vector<128x128xf32>
    %10 = arith.addf %6, %9 : vector<128x128xf32>
    %c0_9 = arith.constant 0 : index
    %c0_10 = arith.constant 0 : index
    %11 = vector.load %arg7[%c0_9, %c0_10] : memref<128x128xf32, #tpu.memory_space<vmem>>, vector<128x128xf32>
    tpu.vector_store %arg7[%c0_9, %c0_10], %10 {strides = array<i32>} : memref<128x128xf32, #tpu.memory_space<vmem>>, vector<128x128xf32>,
    %c0_i32_11 = arith.constant 0 : i32
    %12 = arith.cmpi eq, %arg1, %c0_i32_11 : i32
    %13 = arith.extui %12 : i1 to i32
    %c0_i32_12 = arith.constant 0 : i32
    %14 = arith.cmpi ne, %13, %c0_i32_12 : i32
    scf.if %14 {
      %c0_13 = arith.constant 0 : index
      %c0_14 = arith.constant 0 : index
      %15 = vector.load %arg7[%c0_13, %c0_14] : memref<128x128xf32, #tpu.memory_space<vmem>>, vector<128x128xf32>
      %c0_15 = arith.constant 0 : index
      %c0_16 = arith.constant 0 : index
      %16 = vector.load %arg5[%c0_15, %c0_16] : memref<1x128xf32, #tpu.memory_space<vmem>>, vector<1x128xf32>
      %17 = vector.broadcast %16 : vector<1x128xf32> to vector<128x128xf32>
      %18 = arith.addf %15, %17 : vector<128x128xf32>
      %c0_17 = arith.constant 0 : index
      %c0_18 = arith.constant 0 : index
      %19 = vector.load %arg6[%c0_17, %c0_18] : memref<128x128xf32, #tpu.memory_space<vmem>>, vector<128x128xf32>
      tpu.vector_store %arg6[%c0_17, %c0_18], %18 {strides = array<i32>} : memref<128x128xf32, #tpu.memory_space<vmem>>, vector<128x128xf32>,
    } else {
    }
    return
  }
  func.func @transform_0(%arg0: i32, %arg1: i32) -> (i32, i32) {
    %c0_i32 = arith.constant 0 : i32
    return %arg0, %arg1 : i32, i32
  }
  func.func @transform_1(%arg0: i32, %arg1: i32) -> (i32, i32) {
    %c0_i32 = arith.constant 0 : i32
    %c0_i32_0 = arith.constant 0 : i32
    return %arg1, %c0_i32 : i32, i32
  }
  func.func @transform_2(%arg0: i32, %arg1: i32) -> (i32, i32) {
    %c0_i32 = arith.constant 0 : i32
    %c0_i32_0 = arith.constant 0 : i32
    %c0_i32_1 = arith.constant 0 : i32
    return %c0_i32, %c0_i32_0 : i32, i32
  }
  func.func @transform_3(%arg0: i32, %arg1: i32) -> (i32, i32) {
    %c0_i32 = arith.constant 0 : i32
    %c0_i32_0 = arith.constant 0 : i32
    %c0_i32_1 = arith.constant 0 : i32
    return %c0_i32, %c0_i32_0 : i32, i32
  }
  func.func @transform_4(%arg0: i32, %arg1: i32) -> (i32, i32) {
    %c0_i32 = arith.constant 0 : i32
    %c0_i32_0 = arith.constant 0 : i32
    return %arg0, %c0_i32 : i32, i32
  }
}

</mosaic_0001>

<llo_original>
// kernel: linear_encoder_forward.1
$region0: #{linear_encoder_forward.1}
  #allocation0 [shape = 'u32[]', space=smem, size = 0x4, offset = 0x4, fixed_abs, tag = 'smem constant byte address 0x4 - core index']
  #allocation1 [shape = 'u32[144,128]{1,0:T(1,128)}', space=vmem, size = 0x12000, scoped, tag = 'internal scratch']
  #allocation2 [shape = 'f32[128,128]{1,0:T(8,128)}', space=vmem, size = 0x10000, scoped, tag = 'scratch operand']
  %s0 = inlined_call_operand.vmem [shape: bf16[128,128], index: 0, kind: input, shape index: {}]
  %s1 = inlined_call_operand.vmem [shape: bf16[128,4], index: 1, kind: input, shape index: {}]
  %s2 = inlined_call_operand.vmem [shape: bf16[4,128], index: 2, kind: input, shape index: {}]
  %s3 = inlined_call_operand.vmem [shape: f32[1,128], index: 3, kind: input, shape index: {}]
  %s4 = inlined_call_operand.vmem [shape: f32[128,128], index: 4, kind: output, shape index: {}]
  %s5 = sld [smem:[#allocation0]]
  $region34: #{linear_encoder_forward.1} parent=0
    _
  %s7 = ssub.s32 1, %s5
  %s8 = scalar_select 0, %s7, %s5
  // Predicated region
  $region2: #{linear_encoder_forward.1} parent=0 // pred_check
    _
  $region3: #{linear_encoder_forward.1} parent=0 // pred_check_branch
    %10 = sbr.rel (0) target = $region5
  $region4: #{linear_encoder_forward.1} parent=0 // pred_region
    _
  $region5: #{linear_encoder_forward.1} parent=0 // pred_fallthru
    _
  // Predicated region
  $region6: #{linear_encoder_forward.1} parent=0 // pred_check
    _
  $region7: #{linear_encoder_forward.1} parent=0 // pred_check_branch
    %12 = sbr.rel (0) target = $region9
  $region8: #{linear_encoder_forward.1} parent=0 // pred_region
    _
  $region9: #{linear_encoder_forward.1} parent=0 // pred_fallthru
    _
  // Predicated region
  $region10: #{linear_encoder_forward.1} parent=0 // pred_check
    _
  $region11: #{linear_encoder_forward.1} parent=0 // pred_check_branch
    %14 = sbr.rel (0) target = $region13
  $region12: #{linear_encoder_forward.1} parent=0 // pred_region
    _
  $region13: #{linear_encoder_forward.1} parent=0 // pred_fallthru
    _
  // Predicated region
  $region14: #{linear_encoder_forward.1} parent=0 // pred_check
    _
  $region15: #{linear_encoder_forward.1} parent=0 // pred_check_branch
    %16 = sbr.rel (0) target = $region17
  $region16: #{linear_encoder_forward.1} parent=0 // pred_region
    _
  $region17: #{linear_encoder_forward.1} parent=0 // pred_fallthru
    _
  %p18 = scmp.eq.s32.totalorder 0, 0
  // Predicated region
  $region18: #{linear_encoder_forward.1} parent=0 // pred_check
    %p19 = pneg %p18
  $region19: #{linear_encoder_forward.1} parent=0 // pred_check_branch
    %21 = sbr.rel (%p19) target = $region21
  $region20: #{linear_encoder_forward.1} parent=0 // pred_region
    %22 = vst [vmem:[#allocation2] sm:$0xff] 0.0
    %23 = vst [vmem:[#allocation2 + $0x8] sm:$0xff] 0.0
    %24 = vst [vmem:[#allocation2 + $0x10] sm:$0xff] 0.0
    %25 = vst [vmem:[#allocation2 + $0x18] sm:$0xff] 0.0
    %26 = vst [vmem:[#allocation2 + $0x20] sm:$0xff] 0.0
    %27 = vst [vmem:[#allocation2 + $0x28] sm:$0xff] 0.0
    %28 = vst [vmem:[#allocation2 + $0x30] sm:$0xff] 0.0
    %29 = vst [vmem:[#allocation2 + $0x38] sm:$0xff] 0.0
    %30 = vst [vmem:[#allocation2 + $0x40] sm:$0xff] 0.0
    %31 = vst [vmem:[#allocation2 + $0x48] sm:$0xff] 0.0
    %32 = vst [vmem:[#allocation2 + $0x50] sm:$0xff] 0.0
    %33 = vst [vmem:[#allocation2 + $0x58] sm:$0xff] 0.0
    %34 = vst [vmem:[#allocation2 + $0x60] sm:$0xff] 0.0
    %35 = vst [vmem:[#allocation2 + $0x68] sm:$0xff] 0.0
    %36 = vst [vmem:[#allocation2 + $0x70] sm:$0xff] 0.0
    %37 = vst [vmem:[#allocation2 + $0x78] sm:$0xff] 0.0
  $region21: #{linear_encoder_forward.1} parent=0 // pred_fallthru
    _
  %v38 = vld [vmem:[%s1] sm:$0xf]
  %v39 = vld [vmem:[%s1 + $0x4] sm:$0xf]
  %v40 = vld [vmem:[%s1 + $0x8] sm:$0xf]
  %v41 = vld [vmem:[%s1 + $0xc] sm:$0xf]
  %v42 = vld [vmem:[%s1 + $0x10] sm:$0xf]
  %v43 = vld [vmem:[%s1 + $0x14] sm:$0xf]
  %v44 = vld [vmem:[%s1 + $0x18] sm:$0xf]
  %v45 = vld [vmem:[%s1 + $0x1c] sm:$0xf]
  %v46 = vld [vmem:[%s1 + $0x20] sm:$0xf]
  %v47 = vld [vmem:[%s1 + $0x24] sm:$0xf]
  %v48 = vld [vmem:[%s1 + $0x28] sm:$0xf]
  %v49 = vld [vmem:[%s1 + $0x2c] sm:$0xf]
  %v50 = vld [vmem:[%s1 + $0x30] sm:$0xf]
  %v51 = vld [vmem:[%s1 + $0x34] sm:$0xf]
  %v52 = vld [vmem:[%s1 + $0x38] sm:$0xf]
  %v53 = vld [vmem:[%s1 + $0x3c] sm:$0xf]
  %v54 = vld [vmem:[%s2] sm:$0x3]
  %v71 = vunpack.c.l.b16 %v38
  %v72 = vunpack.c.l.b16 %v39
  %v73 = vunpack.c.l.b16 %v40
  %v74 = vunpack.c.l.b16 %v41
  %v75 = vunpack.c.l.b16 %v42
  %v76 = vunpack.c.l.b16 %v43
  %v77 = vunpack.c.l.b16 %v44
  %v78 = vunpack.c.l.b16 %v45
  %v79 = vunpack.c.l.b16 %v46
  %v80 = vunpack.c.l.b16 %v47
  %v81 = vunpack.c.l.b16 %v48
  %v82 = vunpack.c.l.b16 %v49
  %v83 = vunpack.c.l.b16 %v50
  %v84 = vunpack.c.l.b16 %v51
  %v85 = vunpack.c.l.b16 %v52
  %v86 = vunpack.c.l.b16 %v53
  %v87 = vpack.c.b16 %v72, %v71
  %v88 = vpack.c.b16 %v74, %v73
  %v89 = vpack.c.b16 %v76, %v75
  %v90 = vpack.c.b16 %v78, %v77
  %v91 = vpack.c.b16 %v80, %v79
  %v92 = vpack.c.b16 %v82, %v81
  %v93 = vpack.c.b16 %v84, %v83
  %v94 = vpack.c.b16 %v86, %v85
  %vm95 = vcmask 31744
  %v97 = vsel %vm95, %v87, 0
  %v100 = vsel %vm95, %v88, 0
  %v103 = vsel %vm95, %v89, 0
  %v106 = vsel %vm95, %v90, 0
  %v109 = vsel %vm95, %v91, 0
  %v112 = vsel %vm95, %v92, 0
  %v115 = vsel %vm95, %v93, 0
  %v118 = vsel %vm95, %v94, 0
  %vm120 = vcmask 1041408
  %v122 = vsel %vm120, %v54, 0
  %124 = vmatprep.subr.bf16.mxu0 0
  %125 = vmatpush1.bf16.msra.mxu0 %v122
  %126 = vmatprep.subr.bf16.mxu0 0
  %127 = vmatpush1.bf16.msra.mxu0 0
  %128 = vmatprep.subr.bf16.mxu0 0
  %129 = vmatpush1.bf16.msra.mxu0 0
  %130 = vmatprep.subr.bf16.mxu0 0
  %131 = vmatpush1.bf16.msra.mxu0 0
  %132 = vmatprep.subr.bf16.mxu0 0
  %133 = vmatpush1.bf16.msra.mxu0 0
  %134 = vmatprep.subr.bf16.mxu0 0
  %135 = vmatpush1.bf16.msra.mxu0 0
  %136 = vmatprep.subr.bf16.mxu0 0
  %137 = vmatpush1.bf16.msra.mxu0 0
  %138 = vmatprep.subr.bf16.mxu0 0
  %139 = vmatpush1.bf16.msra.mxu0 0
  %140 = vmatprep.subr.bf16.mxu0 0
  %141 = vmatpush1.bf16.msra.mxu0 0
  %142 = vmatprep.subr.bf16.mxu0 0
  %143 = vmatpush1.bf16.msra.mxu0 0
  %144 = vmatprep.subr.bf16.mxu0 0
  %145 = vmatpush1.bf16.msra.mxu0 0
  %146 = vmatprep.subr.bf16.mxu0 0
  %147 = vmatpush1.bf16.msra.mxu0 0
  %148 = vmatprep.subr.bf16.mxu0 0
  %149 = vmatpush1.bf16.msra.mxu0 0
  %150 = vmatprep.subr.bf16.mxu0 0
  %151 = vmatpush1.bf16.msra.mxu0 0
  %152 = vmatprep.subr.bf16.mxu0 0
  %153 = vmatpush1.bf16.msra.mxu0 0
  %154 = vmatprep.subr.bf16.mxu0 0
  %155 = vmatpush1.bf16.msra.mxu0 0
  %156 = vmatprep.mubr.bf16.mxu0 0
  %157 = vmatmul.mubr.bf16.gmra.mrb[0].mxu0 %v97
  %v158 = vpop.f32.mrb[0].mxu0
  %v159 = vadd.f32 0.0, %v158
  %v160 = vpop.f32.mrb[0].mxu0
  %v161 = vpop.f32.mrb[0].mxu0
  %v162 = vadd.f32 0.0, %v161
  %v163 = vpop.f32.mrb[0].mxu0
  %164 = vmatprep.mubr.bf16.mxu0 0
  %165 = vmatmul.mubr.bf16.gmra.mrb[0].mxu0 %v100
  %v166 = vpop.f32.mrb[0].mxu0
  %v167 = vadd.f32 0.0, %v166
  %v168 = vpop.f32.mrb[0].mxu0
  %v169 = vpop.f32.mrb[0].mxu0
  %v170 = vadd.f32 0.0, %v169
  %v171 = vpop.f32.mrb[0].mxu0
  %172 = vmatprep.mubr.bf16.mxu0 0
  %173 = vmatmul.mubr.bf16.gmra.mrb[0].mxu0 %v103
  %v174 = vpop.f32.mrb[0].mxu0
  %v175 = vadd.f32 0.0, %v174
  %v176 = vpop.f32.mrb[0].mxu0
  %v177 = vpop.f32.mrb[0].mxu0
  %v178 = vadd.f32 0.0, %v177
  %v179 = vpop.f32.mrb[0].mxu0
  %180 = vmatprep.mubr.bf16.mxu0 0
  %181 = vmatmul.mubr.bf16.gmra.mrb[0].mxu0 %v106
  %v182 = vpop.f32.mrb[0].mxu0
  %v183 = vadd.f32 0.0, %v182
  %v184 = vpop.f32.mrb[0].mxu0
  %v185 = vpop.f32.mrb[0].mxu0
  %v186 = vadd.f32 0.0, %v185
  %v187 = vpop.f32.mrb[0].mxu0
  %188 = vmatprep.mubr.bf16.mxu0 0
  %189 = vmatmul.mubr.bf16.gmra.mrb[0].mxu0 %v109
  %v190 = vpop.f32.mrb[0].mxu0
  %v191 = vadd.f32 0.0, %v190
  %v192 = vpop.f32.mrb[0].mxu0
  %v193 = vpop.f32.mrb[0].mxu0
  %v194 = vadd.f32 0.0, %v193
  %v195 = vpop.f32.mrb[0].mxu0
  %196 = vmatprep.mubr.bf16.mxu0 0
  %197 = vmatmul.mubr.bf16.gmra.mrb[0].mxu0 %v112
  %v198 = vpop.f32.mrb[0].mxu0
  %v199 = vadd.f32 0.0, %v198
  %v200 = vpop.f32.mrb[0].mxu0
  %v201 = vpop.f32.mrb[0].mxu0
  %v202 = vadd.f32 0.0, %v201
  %v203 = vpop.f32.mrb[0].mxu0
  %204 = vmatprep.mubr.bf16.mxu0 0
  %205 = vmatmul.mubr.bf16.gmra.mrb[0].mxu0 %v115
  %v206 = vpop.f32.mrb[0].mxu0
  %v207 = vadd.f32 0.0, %v206
  %v208 = vpop.f32.mrb[0].mxu0
  %v209 = vpop.f32.mrb[0].mxu0
  %v210 = vadd.f32 0.0, %v209
  %v211 = vpop.f32.mrb[0].mxu0
  %212 = vmatprep.mubr.bf16.mxu0 0
  %213 = vmatmul.mubr.bf16.gmra.mrb[0].mxu0 %v118
  %v214 = vpop.f32.mrb[0].mxu0
  %v215 = vadd.f32 0.0, %v214
  %v216 = vpop.f32.mrb[0].mxu0
  %v217 = vpop.f32.mrb[0].mxu0
  %v218 = vadd.f32 0.0, %v217
  %v219 = vpop.f32.mrb[0].mxu0
  %220 = vdwg.mxu0
  %v221 = vld [vmem:[#allocation2] sm:$0xff]
  %v222 = vld [vmem:[#allocation2 + $0x8] sm:$0xff]
  %v223 = vld [vmem:[#allocation2 + $0x10] sm:$0xff]
  %v224 = vld [vmem:[#allocation2 + $0x18] sm:$0xff]
  %v225 = vld [vmem:[#allocation2 + $0x20] sm:$0xff]
  %v226 = vld [vmem:[#allocation2 + $0x28] sm:$0xff]
  %v227 = vld [vmem:[#allocation2 + $0x30] sm:$0xff]
  %v228 = vld [vmem:[#allocation2 + $0x38] sm:$0xff]
  %v229 = vld [vmem:[#allocation2 + $0x40] sm:$0xff]
  %v230 = vld [vmem:[#allocation2 + $0x48] sm:$0xff]
  %v231 = vld [vmem:[#allocation2 + $0x50] sm:$0xff]
  %v232 = vld [vmem:[#allocation2 + $0x58] sm:$0xff]
  %v233 = vld [vmem:[#allocation2 + $0x60] sm:$0xff]
  %v234 = vld [vmem:[#allocation2 + $0x68] sm:$0xff]
  %v235 = vld [vmem:[#allocation2 + $0x70] sm:$0xff]
  %v236 = vld [vmem:[#allocation2 + $0x78] sm:$0xff]
  %v237 = vld [vmem:[%s0] sm:$0xf]
  %v238 = vld [vmem:[%s0 + $0x4] sm:$0xf]
  %v239 = vld [vmem:[%s0 + $0x8] sm:$0xf]
  %v240 = vld [vmem:[%s0 + $0xc] sm:$0xf]
  %v241 = vld [vmem:[%s0 + $0x10] sm:$0xf]
  %v242 = vld [vmem:[%s0 + $0x14] sm:$0xf]
  %v243 = vld [vmem:[%s0 + $0x18] sm:$0xf]
  %v244 = vld [vmem:[%s0 + $0x1c] sm:$0xf]
  %v245 = vld [vmem:[%s0 + $0x20] sm:$0xf]
  %v246 = vld [vmem:[%s0 + $0x24] sm:$0xf]
  %v247 = vld [vmem:[%s0 + $0x28] sm:$0xf]
  %v248 = vld [vmem:[%s0 + $0x2c] sm:$0xf]
  %v249 = vld [vmem:[%s0 + $0x30] sm:$0xf]
  %v250 = vld [vmem:[%s0 + $0x34] sm:$0xf]
  %v251 = vld [vmem:[%s0 + $0x38] sm:$0xf]
  %v252 = vld [vmem:[%s0 + $0x3c] sm:$0xf]
  %v253 = vpack.c.bf16 %v162, %v159
  %v254 = vpack.c.bf16 %v170, %v167
  %v255 = vpack.c.bf16 %v178, %v175
  %v256 = vpack.c.bf16 %v186, %v183
  %v257 = vpack.c.bf16 %v194, %v191
  %v258 = vpack.c.bf16 %v202, %v199
  %v259 = vpack.c.bf16 %v210, %v207
  %v260 = vpack.c.bf16 %v218, %v215
  %v277 = vunpack.c.l.b16 %v237
  %v278 = vunpack.c.l.b16 %v238
  %v279 = vunpack.c.l.b16 %v239
  %v280 = vunpack.c.l.b16 %v240
  %v281 = vunpack.c.l.b16 %v241
  %v282 = vunpack.c.l.b16 %v242
  %v283 = vunpack.c.l.b16 %v243
  %v284 = vunpack.c.l.b16 %v244
  %v285 = vunpack.c.l.b16 %v245
  %v286 = vunpack.c.l.b16 %v246
  %v287 = vunpack.c.l.b16 %v247
  %v288 = vunpack.c.l.b16 %v248
  %v289 = vunpack.c.l.b16 %v249
  %v290 = vunpack.c.l.b16 %v250
  %v291 = vunpack.c.l.b16 %v251
  %v292 = vunpack.c.l.b16 %v252
  %v293 = vpack.c.b16 %v278, %v277
  %v294 = vpack.c.b16 %v280, %v279
  %v295 = vpack.c.b16 %v282, %v281
  %v296 = vpack.c.b16 %v284, %v283
  %v297 = vpack.c.b16 %v286, %v285
  %v298 = vpack.c.b16 %v288, %v287
  %v299 = vpack.c.b16 %v290, %v289
  %v300 = vpack.c.b16 %v292, %v291
  %309 = vmatprep.subr.bf16.mxu0 0
  %310 = vmatpush1.bf16.msra.mxu0 %v253
  %311 = vmatprep.subr.bf16.mxu0 0
  %312 = vmatpush1.bf16.msra.mxu0 %v254
  %313 = vmatprep.subr.bf16.mxu0 0
  %314 = vmatpush1.bf16.msra.mxu0 %v255
  %315 = vmatprep.subr.bf16.mxu0 0
  %316 = vmatpush1.bf16.msra.mxu0 %v256
  %317 = vmatprep.subr.bf16.mxu0 0
  %318 = vmatpush1.bf16.msra.mxu0 %v257
  %319 = vmatprep.subr.bf16.mxu0 0
  %320 = vmatpush1.bf16.msra.mxu0 %v258
  %321 = vmatprep.subr.bf16.mxu0 0
  %322 = vmatpush1.bf16.msra.mxu0 %v259
  %323 = vmatprep.subr.bf16.mxu0 0
  %324 = vmatpush1.bf16.msra.mxu0 %v260
  %325 = vmatprep.subr.bf16.mxu0 0
  %326 = vmatpush1.bf16.msra.mxu0 0
  %327 = vmatprep.subr.bf16.mxu0 0
  %328 = vmatpush1.bf16.msra.mxu0 0
  %329 = vmatprep.subr.bf16.mxu0 0
  %330 = vmatpush1.bf16.msra.mxu0 0
  %331 = vmatprep.subr.bf16.mxu0 0
  %332 = vmatpush1.bf16.msra.mxu0 0
  %333 = vmatprep.subr.bf16.mxu0 0
  %334 = vmatpush1.bf16.msra.mxu0 0
  %335 = vmatprep.subr.bf16.mxu0 0
  %336 = vmatpush1.bf16.msra.mxu0 0
  %337 = vmatprep.subr.bf16.mxu0 0
  %338 = vmatpush1.bf16.msra.mxu0 0
  %339 = vmatprep.subr.bf16.mxu0 0
  %340 = vmatpush1.bf16.msra.mxu0 0
  %341 = vmatprep.mubr.bf16.mxu0 0
  %342 = vmatmul.mubr.bf16.gmra.mrb[0].mxu0 %v293
  %v343 = vpop.f32.mrb[0].mxu0
  %v344 = vadd.f32 0.0, %v343
  %v345 = vpop.f32.mrb[0].mxu0
  %v346 = vpop.f32.mrb[0].mxu0
  %v347 = vadd.f32 0.0, %v346
  %v348 = vpop.f32.mrb[0].mxu0
  %349 = vmatprep.mubr.bf16.mxu0 0
  %350 = vmatmul.mubr.bf16.gmra.mrb[0].mxu0 %v294
  %v351 = vpop.f32.mrb[0].mxu0
  %v352 = vadd.f32 0.0, %v351
  %v353 = vpop.f32.mrb[0].mxu0
  %v354 = vpop.f32.mrb[0].mxu0
  %v355 = vadd.f32 0.0, %v354
  %v356 = vpop.f32.mrb[0].mxu0
  %357 = vmatprep.mubr.bf16.mxu0 0
  %358 = vmatmul.mubr.bf16.gmra.mrb[0].mxu0 %v295
  %v359 = vpop.f32.mrb[0].mxu0
  %v360 = vadd.f32 0.0, %v359
  %v361 = vpop.f32.mrb[0].mxu0
  %v362 = vpop.f32.mrb[0].mxu0
  %v363 = vadd.f32 0.0, %v362
  %v364 = vpop.f32.mrb[0].mxu0
  %365 = vmatprep.mubr.bf16.mxu0 0
  %366 = vmatmul.mubr.bf16.gmra.mrb[0].mxu0 %v296
  %v367 = vpop.f32.mrb[0].mxu0
  %v368 = vadd.f32 0.0, %v367
  %v369 = vpop.f32.mrb[0].mxu0
  %v370 = vpop.f32.mrb[0].mxu0
  %v371 = vadd.f32 0.0, %v370
  %v372 = vpop.f32.mrb[0].mxu0
  %373 = vmatprep.mubr.bf16.mxu0 0
  %374 = vmatmul.mubr.bf16.gmra.mrb[0].mxu0 %v297
  %v375 = vpop.f32.mrb[0].mxu0
  %v376 = vadd.f32 0.0, %v375
  %v377 = vpop.f32.mrb[0].mxu0
  %v378 = vpop.f32.mrb[0].mxu0
  %v379 = vadd.f32 0.0, %v378
  %v380 = vpop.f32.mrb[0].mxu0
  %381 = vmatprep.mubr.bf16.mxu0 0
  %382 = vmatmul.mubr.bf16.gmra.mrb[0].mxu0 %v298
  %v383 = vpop.f32.mrb[0].mxu0
  %v384 = vadd.f32 0.0, %v383
  %v385 = vpop.f32.mrb[0].mxu0
  %v386 = vpop.f32.mrb[0].mxu0
  %v387 = vadd.f32 0.0, %v386
  %v388 = vpop.f32.mrb[0].mxu0
  %389 = vmatprep.mubr.bf16.mxu0 0
  %390 = vmatmul.mubr.bf16.gmra.mrb[0].mxu0 %v299
  %v391 = vpop.f32.mrb[0].mxu0
  %v392 = vadd.f32 0.0, %v391
  %v393 = vpop.f32.mrb[0].mxu0
  %v394 = vpop.f32.mrb[0].mxu0
  %v395 = vadd.f32 0.0, %v394
  %v396 = vpop.f32.mrb[0].mxu0
  %397 = vmatprep.mubr.bf16.mxu0 0
  %398 = vmatmul.mubr.bf16.gmra.mrb[0].mxu0 %v300
  %v399 = vpop.f32.mrb[0].mxu0
  %v400 = vadd.f32 0.0, %v399
  %v401 = vpop.f32.mrb[0].mxu0
  %v402 = vpop.f32.mrb[0].mxu0
  %v403 = vadd.f32 0.0, %v402
  %v404 = vpop.f32.mrb[0].mxu0
  %405 = vdwg.mxu0
  %v406 = vadd.f32 %v221, %v344
  %v407 = vadd.f32 %v222, %v347
  %v408 = vadd.f32 %v223, %v352
  %v409 = vadd.f32 %v224, %v355
  %v410 = vadd.f32 %v225, %v360
  %v411 = vadd.f32 %v226, %v363
  %v412 = vadd.f32 %v227, %v368
  %v413 = vadd.f32 %v228, %v371
  %v414 = vadd.f32 %v229, %v376
  %v415 = vadd.f32 %v230, %v379
  %v416 = vadd.f32 %v231, %v384
  %v417 = vadd.f32 %v232, %v387
  %v418 = vadd.f32 %v233, %v392
  %v419 = vadd.f32 %v234, %v395
  %v420 = vadd.f32 %v235, %v400
  %v421 = vadd.f32 %v236, %v403
  %422 = vst [vmem:[#allocation2] sm:$0xff] %v406
  %423 = vst [vmem:[#allocation2 + $0x8] sm:$0xff] %v407
  %424 = vst [vmem:[#allocation2 + $0x10] sm:$0xff] %v408
  %425 = vst [vmem:[#allocation2 + $0x18] sm:$0xff] %v409
  %426 = vst [vmem:[#allocation2 + $0x20] sm:$0xff] %v410
  %427 = vst [vmem:[#allocation2 + $0x28] sm:$0xff] %v411
  %428 = vst [vmem:[#allocation2 + $0x30] sm:$0xff] %v412
  %429 = vst [vmem:[#allocation2 + $0x38] sm:$0xff] %v413
  %430 = vst [vmem:[#allocation2 + $0x40] sm:$0xff] %v414
  %431 = vst [vmem:[#allocation2 + $0x48] sm:$0xff] %v415
  %432 = vst [vmem:[#allocation2 + $0x50] sm:$0xff] %v416
  %433 = vst [vmem:[#allocation2 + $0x58] sm:$0xff] %v417
  %434 = vst [vmem:[#allocation2 + $0x60] sm:$0xff] %v418
  %435 = vst [vmem:[#allocation2 + $0x68] sm:$0xff] %v419
  %436 = vst [vmem:[#allocation2 + $0x70] sm:$0xff] %v420
  %437 = vst [vmem:[#allocation2 + $0x78] sm:$0xff] %v421
  // Predicated region
  $region22: #{linear_encoder_forward.1} parent=0 // pred_check
    %p438 = pneg %p18
  $region23: #{linear_encoder_forward.1} parent=0 // pred_check_branch
    %440 = sbr.rel (%p438) target = $region25
  $region24: #{linear_encoder_forward.1} parent=0 // pred_region
    %v441 = vld [vmem:[#allocation2] sm:$0xff]
    %v442 = vld [vmem:[#allocation2 + $0x8] sm:$0xff]
    %v443 = vld [vmem:[#allocation2 + $0x10] sm:$0xff]
    %v444 = vld [vmem:[#allocation2 + $0x18] sm:$0xff]
    %v445 = vld [vmem:[#allocation2 + $0x20] sm:$0xff]
    %v446 = vld [vmem:[#allocation2 + $0x28] sm:$0xff]
    %v447 = vld [vmem:[#allocation2 + $0x30] sm:$0xff]
    %v448 = vld [vmem:[#allocation2 + $0x38] sm:$0xff]
    %v449 = vld [vmem:[#allocation2 + $0x40] sm:$0xff]
    %v450 = vld [vmem:[#allocation2 + $0x48] sm:$0xff]
    %v451 = vld [vmem:[#allocation2 + $0x50] sm:$0xff]
    %v452 = vld [vmem:[#allocation2 + $0x58] sm:$0xff]
    %v453 = vld [vmem:[#allocation2 + $0x60] sm:$0xff]
    %v454 = vld [vmem:[#allocation2 + $0x68] sm:$0xff]
    %v455 = vld [vmem:[#allocation2 + $0x70] sm:$0xff]
    %v456 = vld [vmem:[#allocation2 + $0x78] sm:$0xff]
    %v457 = vld [vmem:[%s3] sm:$0x1]
    %v459 = vlaneseq
    %v460 = vshrl.u32 %v459, 7
    %v461 = vsub.s32 0, %v460
    %v462 = vrot.slane %v457, %v461
    %v464 = vadd.f32 %v441, %v462
    %v465 = vadd.f32 %v442, %v462
    %v466 = vadd.f32 %v443, %v462
    %v467 = vadd.f32 %v444, %v462
    %v468 = vadd.f32 %v445, %v462
    %v469 = vadd.f32 %v446, %v462
    %v470 = vadd.f32 %v447, %v462
    %v471 = vadd.f32 %v448, %v462
    %v472 = vadd.f32 %v449, %v462
    %v473 = vadd.f32 %v450, %v462
    %v474 = vadd.f32 %v451, %v462
    %v475 = vadd.f32 %v452, %v462
    %v476 = vadd.f32 %v453, %v462
    %v477 = vadd.f32 %v454, %v462
    %v478 = vadd.f32 %v455, %v462
    %v479 = vadd.f32 %v456, %v462
    %480 = vst [vmem:[%s4] sm:$0xff] %v464
    %481 = vst [vmem:[%s4 + $0x8] sm:$0xff] %v465
    %482 = vst [vmem:[%s4 + $0x10] sm:$0xff] %v466
    %483 = vst [vmem:[%s4 + $0x18] sm:$0xff] %v467
    %484 = vst [vmem:[%s4 + $0x20] sm:$0xff] %v468
    %485 = vst [vmem:[%s4 + $0x28] sm:$0xff] %v469
    %486 = vst [vmem:[%s4 + $0x30] sm:$0xff] %v470
    %487 = vst [vmem:[%s4 + $0x38] sm:$0xff] %v471
    %488 = vst [vmem:[%s4 + $0x40] sm:$0xff] %v472
    %489 = vst [vmem:[%s4 + $0x48] sm:$0xff] %v473
    %490 = vst [vmem:[%s4 + $0x50] sm:$0xff] %v474
    %491 = vst [vmem:[%s4 + $0x58] sm:$0xff] %v475
    %492 = vst [vmem:[%s4 + $0x60] sm:$0xff] %v476
    %493 = vst [vmem:[%s4 + $0x68] sm:$0xff] %v477
    %494 = vst [vmem:[%s4 + $0x70] sm:$0xff] %v478
    %495 = vst [vmem:[%s4 + $0x78] sm:$0xff] %v479
  $region25: #{linear_encoder_forward.1} parent=0 // pred_fallthru
    _
  // Predicated region
  $region26: #{linear_encoder_forward.1} parent=0 // pred_check
    _
  $region27: #{linear_encoder_forward.1} parent=0 // pred_check_branch
    %497 = sbr.rel (0) target = $region29
  $region28: #{linear_encoder_forward.1} parent=0 // pred_region
    _
  $region29: #{linear_encoder_forward.1} parent=0 // pred_fallthru
    _
  // Predicated region
  $region30: #{linear_encoder_forward.1} parent=0 // pred_check
    _
  $region31: #{linear_encoder_forward.1} parent=0 // pred_check_branch
    %499 = sbr.rel (0) target = $region33
  $region32: #{linear_encoder_forward.1} parent=0 // pred_region
    _
  $region33: #{linear_encoder_forward.1} parent=0 // pred_fallthru
    _

</llo_original>
